<compile_context>
chip_gen: v7x
topology: tpu7x:2x2x1
jax: 0.10.0
libtpu: 0.0.40
codegen_flags: <defaults>
</compile_context>

<pallas_src>
import functools

import jax
import jax.numpy as jnp
from jax.experimental import pallas as pl
from jax.experimental.pallas import tpu as pltpu


def _meta_opt_kernel(x_ref, w1_ref, b1_ref, w2_ref, b2_ref, w3_ref, b3_ref,
                     o_ref):
    # x_ref: (in_size, block_b)  -- batch on the lane axis.
    cdt = w1_ref.dtype  # compute dtype for the MXU (f32 or bf16)

    x = x_ref[...].astype(cdt)

    # Hoist bias loads / casts (single read per block; stays f32 everywhere,
    # incl. v5e which has no bf16 VPU/EUP).
    b1 = b1_ref[...].astype(jnp.float32)   # (hid, 1) -> broadcasts along lanes
    b2 = b2_ref[...].astype(jnp.float32)
    b3 = b3_ref[...].astype(jnp.float32)

    # l2h + tanh : (hid, in) @ (in, B) -> (hid, B), f32 accumulation
    h = jnp.dot(w1_ref[...], x, preferred_element_type=jnp.float32)
    h = jnp.tanh(h + b1)

    # h2h + tanh
    h = jnp.dot(w2_ref[...], h.astype(cdt), preferred_element_type=jnp.float32)
    h = jnp.tanh(h + b2)

    # h2i + tanh
    y = jnp.dot(w3_ref[...], h.astype(cdt), preferred_element_type=jnp.float32)
    y = jnp.tanh(y + b3)

    o_ref[...] = y.astype(o_ref.dtype)


def _pick_block_b(B):
    """Lane-aligned batch tile.

    Small batches: one block equal to the full batch (allowed by the (8,128)
    rule since block == full array dim).  Large batches: multiple-of-128 tile,
    capped for VMEM, and <= B//2 so the "parallel" grid axis has at least two
    steps (keeps both TensorCores busy on v7x; harmless on v5e/v6e).
    """
    if B <= 256:
        return B
    blk = min(4096, (B // 2 // 128) * 128)
    return max(blk, 128)


@functools.partial(jax.jit, static_argnames=("block_b", "compute_dtype"))
def meta_optimizer_forward(x, params, block_b=None, compute_dtype=None):
    """x: (B, input_size). params: PyTorch-layout dict w1,b1,w2,b2,w3,b3.

    w1: (hidden, input), w2: (hidden, hidden), w3: (input, hidden),
    biases: (out_features, 1).
    """
    B, in_size = x.shape
    hidden = params["w1"].shape[0]
    out_dtype = x.dtype
    cdt = compute_dtype if compute_dtype is not None else x.dtype

    # Feature-major layout: batch on the lane axis (layout plumbing only).
    xT = x.T.astype(cdt)                                   # (in_size, B)
    w1 = params["w1"].astype(cdt)
    w2 = params["w2"].astype(cdt)
    w3 = params["w3"].astype(cdt)
    b1 = params["b1"].astype(jnp.float32)                  # (hid, 1)
    b2 = params["b2"].astype(jnp.float32)                  # (hid, 1)
    b3 = params["b3"].astype(jnp.float32)                  # (in, 1)

    blk = _pick_block_b(B) if block_b is None else block_b
    n_blocks = pl.cdiv(B, blk)
    Bp = n_blocks * blk
    if Bp != B:
        xT = jnp.pad(xT, ((0, 0), (0, Bp - B)))            # pad batch, slice later

    grid_spec = pl.GridSpec(
        grid=(n_blocks,),
        in_specs=[
            pl.BlockSpec((in_size, blk), lambda i: (0, i)),    # xT tile
            pl.BlockSpec((hidden, in_size), lambda i: (0, 0)), # w1 (resident)
            pl.BlockSpec((hidden, 1), lambda i: (0, 0)),       # b1
            pl.BlockSpec((hidden, hidden), lambda i: (0, 0)),  # w2
            pl.BlockSpec((hidden, 1), lambda i: (0, 0)),       # b2
            pl.BlockSpec((in_size, hidden), lambda i: (0, 0)), # w3
            pl.BlockSpec((in_size, 1), lambda i: (0, 0)),      # b3
        ],
        out_specs=pl.BlockSpec((in_size, blk), lambda i: (0, i)),
    )

    yT = pl.pallas_call(
        _meta_opt_kernel,
        out_shape=jax.ShapeDtypeStruct((in_size, Bp), out_dtype),
        grid_spec=grid_spec,
        compiler_params=pltpu.CompilerParams(
            dimension_semantics=("parallel",)),
    )(xT, w1, b1, w2, b2, w3, b3)

    # TODO(synk): if DMA is still exposed at very large B, bump the xT input
    # to pipeline_mode=pl.Buffered(3).
    return yT[:, :B].T


def init_params(key, input_size, hidden_size, dtype=jnp.float32):
    """nn.Linear-style init: U(-1/sqrt(fan_in), 1/sqrt(fan_in)).

    Weights in PyTorch layout (out_features, in_features); biases (out, 1).
    """
    ks = jax.random.split(key, 6)

    def linear(kw, kb, fan_in, fan_out):
        bound = 1.0 / jnp.sqrt(fan_in)
        w = jax.random.uniform(kw, (fan_out, fan_in), dtype, -bound, bound)
        b = jax.random.uniform(kb, (fan_out, 1), dtype, -bound, bound)
        return w, b

    w1, b1 = linear(ks[0], ks[1], input_size, hidden_size)   # l2h
    w2, b2 = linear(ks[2], ks[3], hidden_size, hidden_size)  # h2h
    w3, b3 = linear(ks[4], ks[5], hidden_size, input_size)   # h2i
    return dict(w1=w1, b1=b1, w2=w2, b2=b2, w3=w3, b3=b3)


def reference_forward(x, p):
    h = jnp.tanh(x @ p["w1"].T + p["b1"][:, 0])
    h = jnp.tanh(h @ p["w2"].T + p["b2"][:, 0])
    return jnp.tanh(h @ p["w3"].T + p["b3"][:, 0])


if __name__ == "__main__":
    input_size = 16
    hidden_size = 32

    key = jax.random.PRNGKey(0)
    k_x, k_x2, k_p = jax.random.split(key, 3)
    params = init_params(k_p, input_size, hidden_size)

    # 1) Small batch, f32, single block (block == full batch dim).
    x_small = jax.random.normal(k_x, (8, input_size), jnp.float32)
    out = jax.block_until_ready(meta_optimizer_forward(x_small, params))
    ref = reference_forward(x_small, params)
    assert out.shape == (8, input_size)
    assert jnp.allclose(out, ref, atol=1e-5, rtol=1e-5), "f32 small-batch mismatch"

    # 2) Batch not divisible by the lane tile -> exercises padding + multi-block grid.
    x_big = jax.random.normal(k_x2, (260, input_size), jnp.float32)
    out_big = jax.block_until_ready(meta_optimizer_forward(x_big, params))
    ref_big = reference_forward(x_big, params)
    assert out_big.shape == (260, input_size)
    assert jnp.allclose(out_big, ref_big, atol=1e-5, rtol=1e-5), "f32 big-batch mismatch"

    # 3) bf16 compute/IO path (f32 accumulation + f32 tanh), looser tolerance.
    out_bf16 = jax.block_until_ready(
        meta_optimizer_forward(x_big, params, compute_dtype=jnp.bfloat16))
    assert jnp.allclose(out_bf16.astype(jnp.float32), ref_big, atol=5e-2), \
        "bf16 path diverged from f32 reference"

    print("KERNEL_OK")
</pallas_src>

<mosaic_0001>
module attributes {stable_mosaic.version = 11 : i64} {
  func.func @_meta_opt_kernel(%arg0: i32, %arg1: memref<16x8xf32, #tpu.memory_space<vmem>>, %arg2: memref<32x16xf32, #tpu.memory_space<vmem>>, %arg3: memref<32x1xf32, #tpu.memory_space<vmem>>, %arg4: memref<32x32xf32, #tpu.memory_space<vmem>>, %arg5: memref<32x1xf32, #tpu.memory_space<vmem>>, %arg6: memref<16x32xf32, #tpu.memory_space<vmem>>, %arg7: memref<16x1xf32, #tpu.memory_space<vmem>>, %arg8: memref<16x8xf32, #tpu.memory_space<vmem>>) attributes {dimension_semantics = [#tpu.dimension_semantics<parallel>], iteration_bounds = array<i64: 1>, scalar_prefetch = 0 : i64, scratch_operands = 0 : i64, tpu.core_type = #tpu.core_type<tc>, window_params = [{transform_indices = @transform_0, window_bounds = array<i64: 16, 8>}, {pipeline_mode = #tpu.pipeline_mode<synchronous>, transform_indices = @transform_1, window_bounds = array<i64: 32, 16>}, {pipeline_mode = #tpu.pipeline_mode<synchronous>, transform_indices = @transform_2, window_bounds = array<i64: 32, 1>}, {pipeline_mode = #tpu.pipeline_mode<synchronous>, transform_indices = @transform_3, window_bounds = array<i64: 32, 32>}, {pipeline_mode = #tpu.pipeline_mode<synchronous>, transform_indices = @transform_4, window_bounds = array<i64: 32, 1>}, {pipeline_mode = #tpu.pipeline_mode<synchronous>, transform_indices = @transform_5, window_bounds = array<i64: 16, 32>}, {pipeline_mode = #tpu.pipeline_mode<synchronous>, transform_indices = @transform_6, window_bounds = array<i64: 16, 1>}, {transform_indices = @transform_7, window_bounds = array<i64: 16, 8>}]} {
    %c0 = arith.constant 0 : index
    %c0_0 = arith.constant 0 : index
    %0 = vector.load %arg1[%c0, %c0_0] : memref<16x8xf32, #tpu.memory_space<vmem>>, vector<16x8xf32>
    %c0_1 = arith.constant 0 : index
    %c0_2 = arith.constant 0 : index
    %1 = vector.load %arg3[%c0_1, %c0_2] : memref<32x1xf32, #tpu.memory_space<vmem>>, vector<32x1xf32>
    %c0_3 = arith.constant 0 : index
    %c0_4 = arith.constant 0 : index
    %2 = vector.load %arg5[%c0_3, %c0_4] : memref<32x1xf32, #tpu.memory_space<vmem>>, vector<32x1xf32>
    %c0_5 = arith.constant 0 : index
    %c0_6 = arith.constant 0 : index
    %3 = vector.load %arg7[%c0_5, %c0_6] : memref<16x1xf32, #tpu.memory_space<vmem>>, vector<16x1xf32>
    %c0_7 = arith.constant 0 : index
    %c0_8 = arith.constant 0 : index
    %4 = vector.load %arg2[%c0_7, %c0_8] : memref<32x16xf32, #tpu.memory_space<vmem>>, vector<32x16xf32>
    %cst = arith.constant dense<0.000000e+00> : vector<32x8xf32>
    %5 = tpu.matmul %4, %0, %cst {dimension_numbers = #tpu.dot_dimension_numbers<[1], [0], [0], [1], [0, 0, 1, 1], [], []>} : vector<32x16xf32>, vector<16x8xf32>, vector<32x8xf32> -> vector<32x8xf32>
    %6 = vector.broadcast %1 : vector<32x1xf32> to vector<32x8xf32>
    %7 = arith.addf %5, %6 : vector<32x8xf32>
    %8 = math.tanh %7 : vector<32x8xf32>
    %c0_9 = arith.constant 0 : index
    %c0_10 = arith.constant 0 : index
    %9 = vector.load %arg4[%c0_9, %c0_10] : memref<32x32xf32, #tpu.memory_space<vmem>>, vector<32x32xf32>
    %cst_11 = arith.constant dense<0.000000e+00> : vector<32x8xf32>
    %10 = tpu.matmul %9, %8, %cst_11 {dimension_numbers = #tpu.dot_dimension_numbers<[1], [0], [0], [1], [0, 0, 1, 1], [], []>} : vector<32x32xf32>, vector<32x8xf32>, vector<32x8xf32> -> vector<32x8xf32>
    %11 = vector.broadcast %2 : vector<32x1xf32> to vector<32x8xf32>
    %12 = arith.addf %10, %11 : vector<32x8xf32>
    %13 = math.tanh %12 : vector<32x8xf32>
    %c0_12 = arith.constant 0 : index
    %c0_13 = arith.constant 0 : index
    %14 = vector.load %arg6[%c0_12, %c0_13] : memref<16x32xf32, #tpu.memory_space<vmem>>, vector<16x32xf32>
    %cst_14 = arith.constant dense<0.000000e+00> : vector<16x8xf32>
    %15 = tpu.matmul %14, %13, %cst_14 {dimension_numbers = #tpu.dot_dimension_numbers<[1], [0], [0], [1], [0, 0, 1, 1], [], []>} : vector<16x32xf32>, vector<32x8xf32>, vector<16x8xf32> -> vector<16x8xf32>
    %16 = vector.broadcast %3 : vector<16x1xf32> to vector<16x8xf32>
    %17 = arith.addf %15, %16 : vector<16x8xf32>
    %18 = math.tanh %17 : vector<16x8xf32>
    %c0_15 = arith.constant 0 : index
    %c0_16 = arith.constant 0 : index
    %19 = vector.load %arg8[%c0_15, %c0_16] : memref<16x8xf32, #tpu.memory_space<vmem>>, vector<16x8xf32>
    tpu.vector_store %arg8[%c0_15, %c0_16], %18 {strides = array<i32>} : memref<16x8xf32, #tpu.memory_space<vmem>>, vector<16x8xf32>,
    return
  }
  func.func @transform_0(%arg0: i32) -> (i32, i32) {
    %c0_i32 = arith.constant 0 : i32
    %c0_i32_0 = arith.constant 0 : i32
    return %c0_i32, %arg0 : i32, i32
  }
  func.func @transform_1(%arg0: i32) -> (i32, i32) {
    %c0_i32 = arith.constant 0 : i32
    %c0_i32_0 = arith.constant 0 : i32
    %c0_i32_1 = arith.constant 0 : i32
    return %c0_i32, %c0_i32_0 : i32, i32
  }
  func.func @transform_2(%arg0: i32) -> (i32, i32) {
    %c0_i32 = arith.constant 0 : i32
    %c0_i32_0 = arith.constant 0 : i32
    %c0_i32_1 = arith.constant 0 : i32
    return %c0_i32, %c0_i32_0 : i32, i32
  }
  func.func @transform_3(%arg0: i32) -> (i32, i32) {
    %c0_i32 = arith.constant 0 : i32
    %c0_i32_0 = arith.constant 0 : i32
    %c0_i32_1 = arith.constant 0 : i32
    return %c0_i32, %c0_i32_0 : i32, i32
  }
  func.func @transform_4(%arg0: i32) -> (i32, i32) {
    %c0_i32 = arith.constant 0 : i32
    %c0_i32_0 = arith.constant 0 : i32
    %c0_i32_1 = arith.constant 0 : i32
    return %c0_i32, %c0_i32_0 : i32, i32
  }
  func.func @transform_5(%arg0: i32) -> (i32, i32) {
    %c0_i32 = arith.constant 0 : i32
    %c0_i32_0 = arith.constant 0 : i32
    %c0_i32_1 = arith.constant 0 : i32
    return %c0_i32, %c0_i32_0 : i32, i32
  }
  func.func @transform_6(%arg0: i32) -> (i32, i32) {
    %c0_i32 = arith.constant 0 : i32
    %c0_i32_0 = arith.constant 0 : i32
    %c0_i32_1 = arith.constant 0 : i32
    return %c0_i32, %c0_i32_0 : i32, i32
  }
  func.func @transform_7(%arg0: i32) -> (i32, i32) {
    %c0_i32 = arith.constant 0 : i32
    %c0_i32_0 = arith.constant 0 : i32
    return %c0_i32, %arg0 : i32, i32
  }
}

</mosaic_0001>

<llo_original>
// kernel: meta_optimizer_forward.1
$region0: #{meta_optimizer_forward.1}
  #allocation0 [shape = 'u32[]', space=smem, size = 0x4, offset = 0x4, fixed_abs, tag = 'smem constant byte address 0x4 - core index']
  #allocation1 [shape = 'u32[144,128]{1,0:T(1,128)}', space=vmem, size = 0x12000, scoped, tag = 'internal scratch']
  %s0 = inlined_call_operand.vmem [shape: f32[16,8], index: 0, kind: input, shape index: {}]
  %s1 = inlined_call_operand.vmem [shape: f32[32,16], index: 1, kind: input, shape index: {}]
  %s2 = inlined_call_operand.vmem [shape: f32[32,1], index: 2, kind: input, shape index: {}]
  %s3 = inlined_call_operand.vmem [shape: f32[32,32], index: 3, kind: input, shape index: {}]
  %s4 = inlined_call_operand.vmem [shape: f32[32,1], index: 4, kind: input, shape index: {}]
  %s5 = inlined_call_operand.vmem [shape: f32[16,32], index: 5, kind: input, shape index: {}]
  %s6 = inlined_call_operand.vmem [shape: f32[16,1], index: 6, kind: input, shape index: {}]
  %s7 = inlined_call_operand.vmem [shape: f32[16,8], index: 7, kind: output, shape index: {}]
  %s8 = sld [smem:[#allocation0]]
  $region38: #{meta_optimizer_forward.1} parent=0
    _
  %s10 = ssub.s32 1, %s8
  %s11 = scalar_select 0, %s10, %s8
  // Predicated region
  $region2: #{meta_optimizer_forward.1} parent=0 // pred_check
    _
  $region3: #{meta_optimizer_forward.1} parent=0 // pred_check_branch
    %13 = sbr.rel (0) target = $region5
  $region4: #{meta_optimizer_forward.1} parent=0 // pred_region
    _
  $region5: #{meta_optimizer_forward.1} parent=0 // pred_fallthru
    _
  // Predicated region
  $region6: #{meta_optimizer_forward.1} parent=0 // pred_check
    _
  $region7: #{meta_optimizer_forward.1} parent=0 // pred_check_branch
    %15 = sbr.rel (0) target = $region9
  $region8: #{meta_optimizer_forward.1} parent=0 // pred_region
    _
  $region9: #{meta_optimizer_forward.1} parent=0 // pred_fallthru
    _
  // Predicated region
  $region10: #{meta_optimizer_forward.1} parent=0 // pred_check
    _
  $region11: #{meta_optimizer_forward.1} parent=0 // pred_check_branch
    %17 = sbr.rel (0) target = $region13
  $region12: #{meta_optimizer_forward.1} parent=0 // pred_region
    _
  $region13: #{meta_optimizer_forward.1} parent=0 // pred_fallthru
    _
  // Predicated region
  $region14: #{meta_optimizer_forward.1} parent=0 // pred_check
    _
  $region15: #{meta_optimizer_forward.1} parent=0 // pred_check_branch
    %19 = sbr.rel (0) target = $region17
  $region16: #{meta_optimizer_forward.1} parent=0 // pred_region
    _
  $region17: #{meta_optimizer_forward.1} parent=0 // pred_fallthru
    _
  // Predicated region
  $region18: #{meta_optimizer_forward.1} parent=0 // pred_check
    _
  $region19: #{meta_optimizer_forward.1} parent=0 // pred_check_branch
    %21 = sbr.rel (0) target = $region21
  $region20: #{meta_optimizer_forward.1} parent=0 // pred_region
    _
  $region21: #{meta_optimizer_forward.1} parent=0 // pred_fallthru
    _
  // Predicated region
  $region22: #{meta_optimizer_forward.1} parent=0 // pred_check
    _
  $region23: #{meta_optimizer_forward.1} parent=0 // pred_check_branch
    %23 = sbr.rel (0) target = $region25
  $region24: #{meta_optimizer_forward.1} parent=0 // pred_region
    _
  $region25: #{meta_optimizer_forward.1} parent=0 // pred_fallthru
    _
  // Predicated region
  $region26: #{meta_optimizer_forward.1} parent=0 // pred_check
    _
  $region27: #{meta_optimizer_forward.1} parent=0 // pred_check_branch
    %25 = sbr.rel (0) target = $region29
  $region28: #{meta_optimizer_forward.1} parent=0 // pred_region
    _
  $region29: #{meta_optimizer_forward.1} parent=0 // pred_fallthru
    _
  %v26 = vld [vmem:[%s0] sm:$0xff]
  %v27 = vld [vmem:[%s0 + $0x8] sm:$0xff]
  %v28 = vld [vmem:[%s2] sm:$0xff]
  %v29 = vld [vmem:[%s2 + $0x8] sm:$0xff]
  %v30 = vld [vmem:[%s2 + $0x10] sm:$0xff]
  %v31 = vld [vmem:[%s2 + $0x18] sm:$0xff]
  %v32 = vld [vmem:[%s4] sm:$0xff]
  %v33 = vld [vmem:[%s4 + $0x8] sm:$0xff]
  %v34 = vld [vmem:[%s4 + $0x10] sm:$0xff]
  %v35 = vld [vmem:[%s4 + $0x18] sm:$0xff]
  %v36 = vld [vmem:[%s6] sm:$0xff]
  %v37 = vld [vmem:[%s6 + $0x8] sm:$0xff]
  %v38 = vld [vmem:[%s1] sm:$0xff]
  %v39 = vld [vmem:[%s1 + $0x8] sm:$0xff]
  %v40 = vld [vmem:[%s1 + $0x10] sm:$0xff]
  %v41 = vld [vmem:[%s1 + $0x18] sm:$0xff]
  %43 = vset.pattern.permute.xlu0 0
  %44 = vperm.xlu0 %43, %v28
  %v45 = vpop.permute.xlu0 %44
  %48 = vset.pattern.permute.xlu0 0
  %49 = vperm.xlu0 %48, %v29
  %v50 = vpop.permute.xlu0 %49
  %53 = vset.pattern.permute.xlu0 0
  %54 = vperm.xlu0 %53, %v30
  %v55 = vpop.permute.xlu0 %54
  %58 = vset.pattern.permute.xlu0 0
  %59 = vperm.xlu0 %58, %v31
  %v60 = vpop.permute.xlu0 %59
  %vm62 = vcmask 130048
  %v64 = vsel %vm62, %v38, 0
  %v67 = vsel %vm62, %v39, 0
  %v70 = vsel %vm62, %v40, 0
  %v73 = vsel %vm62, %v41, 0
  %75 = vmatprep.subr.mxu0 0.0
  %76 = vmatpush1.msra.mxu0 %v26
  %77 = vmatprep.subr.mxu0 0.0
  %78 = vmatpush1.msra.mxu0 %v27
  %79 = vmatprep.subr.mxu0 0.0
  %80 = vmatpush1.msra.mxu0 0.0
  %81 = vmatprep.subr.mxu0 0.0
  %82 = vmatpush1.msra.mxu0 0.0
  %83 = vmatprep.subr.mxu0 0.0
  %84 = vmatpush1.msra.mxu0 0.0
  %85 = vmatprep.subr.mxu0 0.0
  %86 = vmatpush1.msra.mxu0 0.0
  %87 = vmatprep.subr.mxu0 0.0
  %88 = vmatpush1.msra.mxu0 0.0
  %89 = vmatprep.subr.mxu0 0.0
  %90 = vmatpush1.msra.mxu0 0.0
  %91 = vmatprep.subr.mxu0 0.0
  %92 = vmatpush1.msra.mxu0 0.0
  %93 = vmatprep.subr.mxu0 0.0
  %94 = vmatpush1.msra.mxu0 0.0
  %95 = vmatprep.subr.mxu0 0.0
  %96 = vmatpush1.msra.mxu0 0.0
  %97 = vmatprep.subr.mxu0 0.0
  %98 = vmatpush1.msra.mxu0 0.0
  %99 = vmatprep.subr.mxu0 0.0
  %100 = vmatpush1.msra.mxu0 0.0
  %101 = vmatprep.subr.mxu0 0.0
  %102 = vmatpush1.msra.mxu0 0.0
  %103 = vmatprep.subr.mxu0 0.0
  %104 = vmatpush1.msra.mxu0 0.0
  %105 = vmatprep.subr.mxu0 0.0
  %106 = vmatpush1.msra.mxu0 0.0
  %107 = vmatprep.subr.mxu0 0.0
  %108 = vmatpush1.msra.mxu0 0.0
  %109 = vmatprep.subr.mxu0 0.0
  %110 = vmatpush1.msra.mxu0 0.0
  %111 = vmatprep.subr.mxu0 0.0
  %112 = vmatpush1.msra.mxu0 0.0
  %113 = vmatprep.subr.mxu0 0.0
  %114 = vmatpush1.msra.mxu0 0.0
  %115 = vmatprep.subr.mxu0 0.0
  %116 = vmatpush1.msra.mxu0 0.0
  %117 = vmatprep.subr.mxu0 0.0
  %118 = vmatpush1.msra.mxu0 0.0
  %119 = vmatprep.subr.mxu0 0.0
  %120 = vmatpush1.msra.mxu0 0.0
  %121 = vmatprep.subr.mxu0 0.0
  %122 = vmatpush1.msra.mxu0 0.0
  %123 = vmatprep.subr.mxu0 0.0
  %124 = vmatpush1.msra.mxu0 0.0
  %125 = vmatprep.subr.mxu0 0.0
  %126 = vmatpush1.msra.mxu0 0.0
  %127 = vmatprep.subr.mxu0 0.0
  %128 = vmatpush1.msra.mxu0 0.0
  %129 = vmatprep.subr.mxu0 0.0
  %130 = vmatpush1.msra.mxu0 0.0
  %131 = vmatprep.subr.mxu0 0.0
  %132 = vmatpush1.msra.mxu0 0.0
  %133 = vmatprep.subr.mxu0 0.0
  %134 = vmatpush1.msra.mxu0 0.0
  %135 = vmatprep.subr.mxu0 0.0
  %136 = vmatpush1.msra.mxu0 0.0
  %137 = vmatprep.subr.mxu0 0.0
  %138 = vmatpush1.msra.mxu0 0.0
  %139 = vmatprep.mubr.f32.mxu0 0.0
  %140 = vmatmul.mubr.f32.gmra.mrb[0].mxu0 %v64
  %v141 = vpop.f32.mrb[0].mxu0
  %v142 = vadd.f32 %v45, %v141
  %v143 = vpop.f32.mrb[0].mxu0
  %144 = vmatprep.mubr.f32.mxu0 0.0
  %145 = vmatmul.mubr.f32.gmra.mrb[0].mxu0 %v67
  %v146 = vpop.f32.mrb[0].mxu0
  %v147 = vadd.f32 %v50, %v146
  %v148 = vpop.f32.mrb[0].mxu0
  %149 = vmatprep.mubr.f32.mxu0 0.0
  %150 = vmatmul.mubr.f32.gmra.mrb[0].mxu0 %v70
  %v151 = vpop.f32.mrb[0].mxu0
  %v152 = vadd.f32 %v55, %v151
  %v153 = vpop.f32.mrb[0].mxu0
  %154 = vmatprep.mubr.f32.mxu0 0.0
  %155 = vmatmul.mubr.f32.gmra.mrb[0].mxu0 %v73
  %v156 = vpop.f32.mrb[0].mxu0
  %v157 = vadd.f32 %v60, %v156
  %v158 = vpop.f32.mrb[0].mxu0
  %159 = vdwg.mxu0
  %v160 = vtanh.pop %v142
  %v161 = vtanh.pop %v147
  %v162 = vtanh.pop %v152
  %v163 = vtanh.pop %v157
  %v164 = vld [vmem:[%s3] sm:$0xff]
  %v165 = vld [vmem:[%s3 + $0x8] sm:$0xff]
  %v166 = vld [vmem:[%s3 + $0x10] sm:$0xff]
  %v167 = vld [vmem:[%s3 + $0x18] sm:$0xff]
  %169 = vset.pattern.permute.xlu0 0
  %170 = vperm.xlu0 %169, %v32
  %v171 = vpop.permute.xlu0 %170
  %174 = vset.pattern.permute.xlu0 0
  %175 = vperm.xlu0 %174, %v33
  %v176 = vpop.permute.xlu0 %175
  %179 = vset.pattern.permute.xlu0 0
  %180 = vperm.xlu0 %179, %v34
  %v181 = vpop.permute.xlu0 %180
  %184 = vset.pattern.permute.xlu0 0
  %185 = vperm.xlu0 %184, %v35
  %v186 = vpop.permute.xlu0 %185
  %vm188 = vcmask 261120
  %v190 = vsel %vm188, %v164, 0
  %v193 = vsel %vm188, %v165, 0
  %v196 = vsel %vm188, %v166, 0
  %v199 = vsel %vm188, %v167, 0
  %201 = vmatprep.subr.mxu0 0.0
  %202 = vmatpush1.msra.mxu0 %v160
  %203 = vmatprep.subr.mxu0 0.0
  %204 = vmatpush1.msra.mxu0 %v161
  %205 = vmatprep.subr.mxu0 0.0
  %206 = vmatpush1.msra.mxu0 %v162
  %207 = vmatprep.subr.mxu0 0.0
  %208 = vmatpush1.msra.mxu0 %v163
  %209 = vmatprep.subr.mxu0 0.0
  %210 = vmatpush1.msra.mxu0 0.0
  %211 = vmatprep.subr.mxu0 0.0
  %212 = vmatpush1.msra.mxu0 0.0
  %213 = vmatprep.subr.mxu0 0.0
  %214 = vmatpush1.msra.mxu0 0.0
  %215 = vmatprep.subr.mxu0 0.0
  %216 = vmatpush1.msra.mxu0 0.0
  %217 = vmatprep.subr.mxu0 0.0
  %218 = vmatpush1.msra.mxu0 0.0
  %219 = vmatprep.subr.mxu0 0.0
  %220 = vmatpush1.msra.mxu0 0.0
  %221 = vmatprep.subr.mxu0 0.0
  %222 = vmatpush1.msra.mxu0 0.0
  %223 = vmatprep.subr.mxu0 0.0
  %224 = vmatpush1.msra.mxu0 0.0
  %225 = vmatprep.subr.mxu0 0.0
  %226 = vmatpush1.msra.mxu0 0.0
  %227 = vmatprep.subr.mxu0 0.0
  %228 = vmatpush1.msra.mxu0 0.0
  %229 = vmatprep.subr.mxu0 0.0
  %230 = vmatpush1.msra.mxu0 0.0
  %231 = vmatprep.subr.mxu0 0.0
  %232 = vmatpush1.msra.mxu0 0.0
  %233 = vmatprep.subr.mxu0 0.0
  %234 = vmatpush1.msra.mxu0 0.0
  %235 = vmatprep.subr.mxu0 0.0
  %236 = vmatpush1.msra.mxu0 0.0
  %237 = vmatprep.subr.mxu0 0.0
  %238 = vmatpush1.msra.mxu0 0.0
  %239 = vmatprep.subr.mxu0 0.0
  %240 = vmatpush1.msra.mxu0 0.0
  %241 = vmatprep.subr.mxu0 0.0
  %242 = vmatpush1.msra.mxu0 0.0
  %243 = vmatprep.subr.mxu0 0.0
  %244 = vmatpush1.msra.mxu0 0.0
  %245 = vmatprep.subr.mxu0 0.0
  %246 = vmatpush1.msra.mxu0 0.0
  %247 = vmatprep.subr.mxu0 0.0
  %248 = vmatpush1.msra.mxu0 0.0
  %249 = vmatprep.subr.mxu0 0.0
  %250 = vmatpush1.msra.mxu0 0.0
  %251 = vmatprep.subr.mxu0 0.0
  %252 = vmatpush1.msra.mxu0 0.0
  %253 = vmatprep.subr.mxu0 0.0
  %254 = vmatpush1.msra.mxu0 0.0
  %255 = vmatprep.subr.mxu0 0.0
  %256 = vmatpush1.msra.mxu0 0.0
  %257 = vmatprep.subr.mxu0 0.0
  %258 = vmatpush1.msra.mxu0 0.0
  %259 = vmatprep.subr.mxu0 0.0
  %260 = vmatpush1.msra.mxu0 0.0
  %261 = vmatprep.subr.mxu0 0.0
  %262 = vmatpush1.msra.mxu0 0.0
  %263 = vmatprep.subr.mxu0 0.0
  %264 = vmatpush1.msra.mxu0 0.0
  %265 = vmatprep.mubr.f32.mxu0 0.0
  %266 = vmatmul.mubr.f32.gmra.mrb[0].mxu0 %v190
  %v267 = vpop.f32.mrb[0].mxu0
  %v268 = vadd.f32 %v171, %v267
  %v269 = vpop.f32.mrb[0].mxu0
  %270 = vmatprep.mubr.f32.mxu0 0.0
  %271 = vmatmul.mubr.f32.gmra.mrb[0].mxu0 %v193
  %v272 = vpop.f32.mrb[0].mxu0
  %v273 = vadd.f32 %v176, %v272
  %v274 = vpop.f32.mrb[0].mxu0
  %275 = vmatprep.mubr.f32.mxu0 0.0
  %276 = vmatmul.mubr.f32.gmra.mrb[0].mxu0 %v196
  %v277 = vpop.f32.mrb[0].mxu0
  %v278 = vadd.f32 %v181, %v277
  %v279 = vpop.f32.mrb[0].mxu0
  %280 = vmatprep.mubr.f32.mxu0 0.0
  %281 = vmatmul.mubr.f32.gmra.mrb[0].mxu0 %v199
  %v282 = vpop.f32.mrb[0].mxu0
  %v283 = vadd.f32 %v186, %v282
  %v284 = vpop.f32.mrb[0].mxu0
  %285 = vdwg.mxu0
  %v286 = vtanh.pop %v268
  %v287 = vtanh.pop %v273
  %v288 = vtanh.pop %v278
  %v289 = vtanh.pop %v283
  %v290 = vld [vmem:[%s5] sm:$0xff]
  %v291 = vld [vmem:[%s5 + $0x8] sm:$0xff]
  %293 = vset.pattern.permute.xlu0 0
  %294 = vperm.xlu0 %293, %v36
  %v295 = vpop.permute.xlu0 %294
  %298 = vset.pattern.permute.xlu0 0
  %299 = vperm.xlu0 %298, %v37
  %v300 = vpop.permute.xlu0 %299
  %v303 = vsel %vm188, %v290, 0
  %v306 = vsel %vm188, %v291, 0
  %308 = vmatprep.subr.mxu0 0.0
  %309 = vmatpush1.msra.mxu0 %v286
  %310 = vmatprep.subr.mxu0 0.0
  %311 = vmatpush1.msra.mxu0 %v287
  %312 = vmatprep.subr.mxu0 0.0
  %313 = vmatpush1.msra.mxu0 %v288
  %314 = vmatprep.subr.mxu0 0.0
  %315 = vmatpush1.msra.mxu0 %v289
  %316 = vmatprep.subr.mxu0 0.0
  %317 = vmatpush1.msra.mxu0 0.0
  %318 = vmatprep.subr.mxu0 0.0
  %319 = vmatpush1.msra.mxu0 0.0
  %320 = vmatprep.subr.mxu0 0.0
  %321 = vmatpush1.msra.mxu0 0.0
  %322 = vmatprep.subr.mxu0 0.0
  %323 = vmatpush1.msra.mxu0 0.0
  %324 = vmatprep.subr.mxu0 0.0
  %325 = vmatpush1.msra.mxu0 0.0
  %326 = vmatprep.subr.mxu0 0.0
  %327 = vmatpush1.msra.mxu0 0.0
  %328 = vmatprep.subr.mxu0 0.0
  %329 = vmatpush1.msra.mxu0 0.0
  %330 = vmatprep.subr.mxu0 0.0
  %331 = vmatpush1.msra.mxu0 0.0
  %332 = vmatprep.subr.mxu0 0.0
  %333 = vmatpush1.msra.mxu0 0.0
  %334 = vmatprep.subr.mxu0 0.0
  %335 = vmatpush1.msra.mxu0 0.0
  %336 = vmatprep.subr.mxu0 0.0
  %337 = vmatpush1.msra.mxu0 0.0
  %338 = vmatprep.subr.mxu0 0.0
  %339 = vmatpush1.msra.mxu0 0.0
  %340 = vmatprep.subr.mxu0 0.0
  %341 = vmatpush1.msra.mxu0 0.0
  %342 = vmatprep.subr.mxu0 0.0
  %343 = vmatpush1.msra.mxu0 0.0
  %344 = vmatprep.subr.mxu0 0.0
  %345 = vmatpush1.msra.mxu0 0.0
  %346 = vmatprep.subr.mxu0 0.0
  %347 = vmatpush1.msra.mxu0 0.0
  %348 = vmatprep.subr.mxu0 0.0
  %349 = vmatpush1.msra.mxu0 0.0
  %350 = vmatprep.subr.mxu0 0.0
  %351 = vmatpush1.msra.mxu0 0.0
  %352 = vmatprep.subr.mxu0 0.0
  %353 = vmatpush1.msra.mxu0 0.0
  %354 = vmatprep.subr.mxu0 0.0
  %355 = vmatpush1.msra.mxu0 0.0
  %356 = vmatprep.subr.mxu0 0.0
  %357 = vmatpush1.msra.mxu0 0.0
  %358 = vmatprep.subr.mxu0 0.0
  %359 = vmatpush1.msra.mxu0 0.0
  %360 = vmatprep.subr.mxu0 0.0
  %361 = vmatpush1.msra.mxu0 0.0
  %362 = vmatprep.subr.mxu0 0.0
  %363 = vmatpush1.msra.mxu0 0.0
  %364 = vmatprep.subr.mxu0 0.0
  %365 = vmatpush1.msra.mxu0 0.0
  %366 = vmatprep.subr.mxu0 0.0
  %367 = vmatpush1.msra.mxu0 0.0
  %368 = vmatprep.subr.mxu0 0.0
  %369 = vmatpush1.msra.mxu0 0.0
  %370 = vmatprep.subr.mxu0 0.0
  %371 = vmatpush1.msra.mxu0 0.0
  %372 = vmatprep.mubr.f32.mxu0 0.0
  %373 = vmatmul.mubr.f32.gmra.mrb[0].mxu0 %v303
  %v374 = vpop.f32.mrb[0].mxu0
  %v375 = vadd.f32 %v295, %v374
  %v376 = vpop.f32.mrb[0].mxu0
  %377 = vmatprep.mubr.f32.mxu0 0.0
  %378 = vmatmul.mubr.f32.gmra.mrb[0].mxu0 %v306
  %v379 = vpop.f32.mrb[0].mxu0
  %v380 = vadd.f32 %v300, %v379
  %v381 = vpop.f32.mrb[0].mxu0
  %382 = vdwg.mxu0
  %v383 = vtanh.pop %v375
  %v384 = vtanh.pop %v380
  %vm385 = vcmask 64512
  %386 = vst.msk [vmem:[%s7] sm:$0xff] %vm385, %v383
  %387 = vst.msk [vmem:[%s7 + $0x8] sm:$0xff] %vm385, %v384
  // Predicated region
  $region30: #{meta_optimizer_forward.1} parent=0 // pred_check
    _
  $region31: #{meta_optimizer_forward.1} parent=0 // pred_check_branch
    %389 = sbr.rel (0) target = $region33
  $region32: #{meta_optimizer_forward.1} parent=0 // pred_region
    _
  $region33: #{meta_optimizer_forward.1} parent=0 // pred_fallthru
    _
  // Predicated region
  $region34: #{meta_optimizer_forward.1} parent=0 // pred_check
    _
  $region35: #{meta_optimizer_forward.1} parent=0 // pred_check_branch
    %391 = sbr.rel (0) target = $region37
  $region36: #{meta_optimizer_forward.1} parent=0 // pred_region
    _
  $region37: #{meta_optimizer_forward.1} parent=0 // pred_fallthru
    _

</llo_original>
